<compile_context>
chip_gen: v5e
topology: v5e:2x2
jax: 0.10.0
libtpu: 0.0.40
codegen_flags: <defaults>
</compile_context>

<pallas_src>
import functools
import math

import jax
import jax.numpy as jnp
from jax import lax
from jax.experimental import pallas as pl
from jax.experimental.pallas import tpu as pltpu

NUM_LABEL = 16
BLUR_RANGE = 3


def _gaussian_val(dist, sigma=1.0):
    return math.exp(-(dist ** 2) / (2.0 * sigma ** 2))


def _or_fold_lanes(x):
    """Bitwise-OR reduction over the lane axis -> (rows, 1).

    Idempotent overlapping halving fold: only static lane slices + VPU ORs,
    works for any width (including odd / non-power-of-two)."""
    width = x.shape[1]
    while width > 1:
        half = (width + 1) // 2
        x = jnp.bitwise_or(x[:, :half], x[:, width - half:width])
        width = half
    return x


def _max_fold_groups(x, num_groups, group_size):
    """Per-column max over `num_groups` stacked groups.

    x: (rows, num_groups*group_size) with layout index = g*group_size + c.
    Returns (rows, group_size) = max over g.  Max is idempotent, so the
    overlapping fold also handles non-power-of-two group counts."""
    g = num_groups
    while g > 1:
        half = (g + 1) // 2
        lo = x[:, :half * group_size]
        hi = x[:, (g - half) * group_size: g * group_size]
        x = jnp.maximum(lo, hi)
        g = half
    return x


def _ce_gsl_kernel(pred_ref, label_ref, out_ref, mask_ref, *,
                   num_label, blur_range, seq_len, seq_tile):
    # pred_ref : (Bt, L*R) lane-dense, x[b, l*R + r] = pred[b, r, l]
    # label_ref: (Bt, Tt)  integer labels (int8 on the wire in the demo)
    # out_ref  : (Bt, 1)   per-batch-row partial sums (un-normalized)
    # mask_ref : (Bt, 1)   int32 VMEM scratch: class-presence bitmask accumulator
    R = num_label
    L = num_label                      # pred's class dim == num_label
    t = pl.program_id(1)
    nt = pl.num_programs(1)

    @pl.when(t == 0)
    def _init():
        mask_ref[...] = jnp.zeros_like(mask_ref)

    # ---- single pass over this label tile: class-presence bitmask ----------
    lab = label_ref[...].astype(jnp.int32)          # widen narrow labels
    # Precondition: labels in [0, num_label).  The clip only keeps the shift
    # well defined for bad inputs (torch's out-of-range behaviour differs).
    lab = jnp.clip(lab, 0, R - 1)
    bits = jnp.left_shift(jnp.int32(1), lab)        # one presence bit / element
    if seq_len % seq_tile != 0:                     # mask the padded tail tile
        lane = lax.broadcasted_iota(jnp.int32, bits.shape, 1)
        bits = jnp.where(t * seq_tile + lane < seq_len, bits, 0)
    mask_ref[...] = jnp.bitwise_or(mask_ref[...], _or_fold_lanes(bits))

    # ---- finalize once per batch block: weights + channel-0 log-softmax ----
    @pl.when(t == nt - 1)
    def _finalize():
        Bt = out_ref.shape[0]

        x = pred_ref[...].astype(jnp.float32)                    # (Bt, L*R)
        # exact per-(b, r) max over the L class groups (dense lane folds)
        m = _max_fold_groups(x, L, R)                            # (Bt, R)
        ex = jnp.exp(x - jnp.tile(m, (1, L)))                    # dense VPU/EUP
        # per-(b, r) sum of exp via one MXU matmul: sel[l*R + r, r'] = (r == r')
        kidx = lax.broadcasted_iota(jnp.int32, (L * R, R), 0)
        cidx = lax.broadcasted_iota(jnp.int32, (L * R, R), 1)
        sel = (kidx % R == cidx).astype(jnp.float32)
        ssum = jnp.dot(ex, sel, preferred_element_type=jnp.float32)   # (Bt, R)
        # log_softmax(pred)[b, r, 0]: channel-0 logits are the first R lanes
        logp0 = x[:, :R] - m - jnp.log(ssum)                     # (Bt, R)

        # Smoothed-label weights from the presence bitmask:
        #   dmin[b, r] = min distance from r to any present class,
        #   w = exp(-dmin^2/2) if dmin <= blur_range else 0   (analytic gaussian)
        mask_sh = jnp.broadcast_to(
            jnp.left_shift(mask_ref[...], blur_range), (Bt, R))  # bias shifts >= 0
        r_idx = lax.broadcasted_iota(jnp.int32, (Bt, R), 1)
        dmin = jnp.full((Bt, R), blur_range + 1, jnp.int32)
        for d in range(blur_range, -1, -1):         # descending -> min wins
            hit = jnp.bitwise_and(
                jnp.bitwise_or(
                    jnp.right_shift(mask_sh, r_idx - d + blur_range),
                    jnp.right_shift(mask_sh, r_idx + d + blur_range)),
                1)
            dmin = jnp.where(hit > 0, jnp.int32(d), dmin)
        df = dmin.astype(jnp.float32)
        w = jnp.where(dmin <= blur_range, jnp.exp(-0.5 * df * df),
                      jnp.float32(0.0))

        out_ref[...] = -jnp.sum(w * logp0, axis=-1, keepdims=True)


def _vmem_limit_bytes():
    try:
        cap = int(pltpu.get_tpu_info().vmem_capacity_bytes)
    except Exception:  # pragma: no cover - conservative fallback
        cap = 128 * 1024 * 1024
    # ~96 MiB on v5e/v6e (128 MiB physical), ~48 MiB on v7x (64 MiB physical)
    return min((cap * 3) // 4, 96 * 1024 * 1024)


def _pick_batch_tile(B, label_itemsize):
    """Batch tile honoring the (8/32, 128) layout rule; aim for >=4 grid steps."""
    sub = 32 if label_itemsize == 1 else 8
    if B % sub != 0 or B <= sub:
        return B
    divisors = [m for m in range(sub, B + 1, sub) if B % m == 0]
    small = [m for m in divisors if m <= B // 4]     # >=4 parallel steps if possible
    return max(small) if small else min(divisors)


def _pick_seq_tile(T, batch_tile, label_itemsize, vmem_limit):
    """Sequence tile: full T when small, else a 128-multiple bounded by VMEM."""
    if T <= 2048:
        return T
    budget = max(128 * batch_tile * label_itemsize, vmem_limit // 16)
    tt = 128
    while tt * 2 * batch_tile * label_itemsize <= budget and tt * 2 < T:
        tt *= 2
    return tt


def ce_loss_with_gsl(pred, label, num_label=NUM_LABEL, blur_range=BLUR_RANGE,
                     batch_tile=None, seq_tile=None):
    B, T, L = pred.shape
    assert L == num_label, "pred last dim must equal num_label"
    assert T >= num_label, "torch scatter_(dim=1) needs seq_len >= num_label"
    assert num_label + 2 * blur_range <= 31, "bitmask path needs small num_label"

    if not jnp.issubdtype(label.dtype, jnp.integer):
        label = label.astype(jnp.int32)
    itemsize = jnp.dtype(label.dtype).itemsize

    vmem_limit = _vmem_limit_bytes()
    Bt = batch_tile if batch_tile is not None else _pick_batch_tile(B, itemsize)
    Tt = seq_tile if seq_tile is not None else _pick_seq_tile(T, Bt, itemsize,
                                                              vmem_limit)
    sub = 32 if itemsize == 1 else 8
    assert B % Bt == 0 and (Bt % sub == 0 or Bt == B)
    assert Tt == T or Tt % 128 == 0

    # Lane-dense pred slab (layout plumbing in XLA, essentially free): only the
    # first num_label sequence rows can ever receive weight, and we lay them out
    # as x[b, l*num_label + r] = pred[b, r, l].
    pred_dense = jnp.transpose(pred[:, :num_label, :], (0, 2, 1)).reshape(
        B, num_label * L)

    grid = (B // Bt, pl.cdiv(T, Tt))
    kernel = functools.partial(_ce_gsl_kernel, num_label=num_label,
                               blur_range=blur_range, seq_len=T, seq_tile=Tt)

    partials = pl.pallas_call(
        kernel,
        out_shape=jax.ShapeDtypeStruct((B, 1), jnp.float32),
        grid_spec=pltpu.PrefetchScalarGridSpec(
            num_scalar_prefetch=0,
            grid=grid,
            in_specs=[
                pl.BlockSpec((Bt, num_label * L), lambda b, t: (b, 0)),
                pl.BlockSpec((Bt, Tt), lambda b, t: (b, t)),
            ],
            out_specs=pl.BlockSpec((Bt, 1), lambda b, t: (b, 0)),
            scratch_shapes=[pltpu.VMEM((Bt, 1), jnp.int32)],
        ),
        compiler_params=pltpu.CompilerParams(
            dimension_semantics=("parallel", "arbitrary"),
            vmem_limit_bytes=vmem_limit),
    )(pred_dense, label)

    return jnp.sum(partials) / jnp.float32(B * T)


def ref_loss(pred, label, num_label, blur_range):
    """Pure-JAX faithful re-implementation of the torch forward (for checking)."""
    B, T, L = pred.shape
    label = label.astype(jnp.int32)
    logp = jax.nn.log_softmax(pred.astype(jnp.float32), axis=-1)
    onehot = jnp.zeros((B, T, L), jnp.float32)
    b_idx = jnp.broadcast_to(jnp.arange(B)[:, None], (B, T))
    for dist in range(blur_range, -1, -1):
        for direction in (1, -1):
            blur_idx = jnp.clip(label + direction * dist, 0, num_label - 1)
            # torch: onehot.scatter_(dim=1, index=blur_idx[..., None], value=decay)
            onehot = onehot.at[b_idx, blur_idx, 0].set(_gaussian_val(dist))
    loss = -(logp * onehot).sum(-1)
    return loss.mean()


if __name__ == "__main__":
    key = jax.random.PRNGKey(0)
    k1, k2, k3, k4 = jax.random.split(key, 4)

    # Case 1: small shapes, single-block grid, int8 labels.
    B, T, L = 16, 64, NUM_LABEL
    pred = jax.random.normal(k1, (B, T, L), dtype=jnp.float32)
    label = jax.random.randint(k2, (B, T), 0, NUM_LABEL,
                               dtype=jnp.int32).astype(jnp.int8)
    ref = jax.block_until_ready(ref_loss(pred, label, NUM_LABEL, BLUR_RANGE))
    out = jax.block_until_ready(ce_loss_with_gsl(pred, label))
    assert abs(float(out) - float(ref)) < 2e-4, (float(out), float(ref))

    # Case 2: 2 parallel batch blocks x 2 sequence blocks (masked tail),
    # exercising the presence-mask accumulation across the "arbitrary" axis.
    B2, T2 = 64, 200
    pred2 = jax.random.normal(k3, (B2, T2, L), dtype=jnp.float32)
    label2 = jax.random.randint(k4, (B2, T2), 0, NUM_LABEL,
                                dtype=jnp.int32).astype(jnp.int8)
    ref2 = jax.block_until_ready(ref_loss(pred2, label2, NUM_LABEL, BLUR_RANGE))
    out2 = jax.block_until_ready(
        ce_loss_with_gsl(pred2, label2, batch_tile=32, seq_tile=128))
    assert abs(float(out2) - float(ref2)) < 2e-4, (float(out2), float(ref2))

    print("KERNEL_OK")
</pallas_src>

<mosaic_0001>
module attributes {stable_mosaic.version = 11 : i64} {
  func.func @_ce_gsl_kernel(%arg0: i32, %arg1: i32, %arg2: memref<16x256xf32, #tpu.memory_space<vmem>>, %arg3: memref<16x64xi8, #tpu.memory_space<vmem>>, %arg4: memref<16x1xf32, #tpu.memory_space<vmem>>, %arg5: memref<16x1xi32, #tpu.memory_space<vmem>>) attributes {dimension_semantics = [#tpu.dimension_semantics<parallel>, #tpu.dimension_semantics<arbitrary>], iteration_bounds = array<i64: 1, 1>, scalar_prefetch = 0 : i64, scratch_operands = 1 : i64, tpu.core_type = #tpu.core_type<tc>, window_params = [{transform_indices = @transform_0, window_bounds = array<i64: 16, 256>}, {transform_indices = @transform_1, window_bounds = array<i64: 16, 64>}, {transform_indices = @transform_2, window_bounds = array<i64: 16, 1>}]} {
    %c0_i32 = arith.constant 0 : i32
    %0 = arith.cmpi eq, %arg1, %c0_i32 : i32
    %1 = arith.extui %0 : i1 to i32
    %c0_i32_0 = arith.constant 0 : i32
    %2 = arith.cmpi ne, %1, %c0_i32_0 : i32
    scf.if %2 {
      %c0_i32_9 = arith.constant 0 : i32
      %35 = vector.broadcast %c0_i32_9 : i32 to vector<16x1xi32>
      %c0_10 = arith.constant 0 : index
      %c0_11 = arith.constant 0 : index
      %36 = vector.load %arg5[%c0_10, %c0_11] : memref<16x1xi32, #tpu.memory_space<vmem>>, vector<16x1xi32>
      tpu.vector_store %arg5[%c0_10, %c0_11], %35 {strides = array<i32>} : memref<16x1xi32, #tpu.memory_space<vmem>>, vector<16x1xi32>,
    } else {
    }
    %c0 = arith.constant 0 : index
    %c0_1 = arith.constant 0 : index
    %3 = vector.load %arg3[%c0, %c0_1] : memref<16x64xi8, #tpu.memory_space<vmem>>, vector<16x64xi8>
    %4 = arith.extsi %3 : vector<16x64xi8> to vector<16x64xi32>
    %c0_i32_2 = arith.constant 0 : i32
    %c15_i32 = arith.constant 15 : i32
    %5 = vector.broadcast %c0_i32_2 : i32 to vector<16x64xi32>
    %6 = arith.maxsi %5, %4 : vector<16x64xi32>
    %7 = vector.broadcast %c15_i32 : i32 to vector<16x64xi32>
    %8 = arith.minsi %7, %6 : vector<16x64xi32>
    %c1_i32 = arith.constant 1 : i32
    %9 = vector.broadcast %c1_i32 : i32 to vector<16x64xi32>
    %10 = arith.shli %9, %8 : vector<16x64xi32>
    %c0_3 = arith.constant 0 : index
    %c0_4 = arith.constant 0 : index
    %11 = vector.load %arg5[%c0_3, %c0_4] : memref<16x1xi32, #tpu.memory_space<vmem>>, vector<16x1xi32>
    %12 = vector.extract_strided_slice %10 {offsets = [0, 0], sizes = [16, 32], strides = [1, 1]} : vector<16x64xi32> to vector<16x32xi32>
    %13 = vector.extract_strided_slice %10 {offsets = [0, 32], sizes = [16, 32], strides = [1, 1]} : vector<16x64xi32> to vector<16x32xi32>
    %14 = arith.ori %12, %13 : vector<16x32xi32>
    %15 = vector.extract_strided_slice %14 {offsets = [0, 0], sizes = [16, 16], strides = [1, 1]} : vector<16x32xi32> to vector<16x16xi32>
    %16 = vector.extract_strided_slice %14 {offsets = [0, 16], sizes = [16, 16], strides = [1, 1]} : vector<16x32xi32> to vector<16x16xi32>
    %17 = arith.ori %15, %16 : vector<16x16xi32>
    %18 = vector.extract_strided_slice %17 {offsets = [0, 0], sizes = [16, 8], strides = [1, 1]} : vector<16x16xi32> to vector<16x8xi32>
    %19 = vector.extract_strided_slice %17 {offsets = [0, 8], sizes = [16, 8], strides = [1, 1]} : vector<16x16xi32> to vector<16x8xi32>
    %20 = arith.ori %18, %19 : vector<16x8xi32>
    %21 = vector.extract_strided_slice %20 {offsets = [0, 0], sizes = [16, 4], strides = [1, 1]} : vector<16x8xi32> to vector<16x4xi32>
    %22 = vector.extract_strided_slice %20 {offsets = [0, 4], sizes = [16, 4], strides = [1, 1]} : vector<16x8xi32> to vector<16x4xi32>
    %23 = arith.ori %21, %22 : vector<16x4xi32>
    %24 = vector.extract_strided_slice %23 {offsets = [0, 0], sizes = [16, 2], strides = [1, 1]} : vector<16x4xi32> to vector<16x2xi32>
    %25 = vector.extract_strided_slice %23 {offsets = [0, 2], sizes = [16, 2], strides = [1, 1]} : vector<16x4xi32> to vector<16x2xi32>
    %26 = arith.ori %24, %25 : vector<16x2xi32>
    %27 = vector.extract_strided_slice %26 {offsets = [0, 0], sizes = [16, 1], strides = [1, 1]} : vector<16x2xi32> to vector<16x1xi32>
    %28 = vector.extract_strided_slice %26 {offsets = [0, 1], sizes = [16, 1], strides = [1, 1]} : vector<16x2xi32> to vector<16x1xi32>
    %29 = arith.ori %27, %28 : vector<16x1xi32>
    %30 = arith.ori %11, %29 : vector<16x1xi32>
    %c0_5 = arith.constant 0 : index
    %c0_6 = arith.constant 0 : index
    %31 = vector.load %arg5[%c0_5, %c0_6] : memref<16x1xi32, #tpu.memory_space<vmem>>, vector<16x1xi32>
    tpu.vector_store %arg5[%c0_5, %c0_6], %30 {strides = array<i32>} : memref<16x1xi32, #tpu.memory_space<vmem>>, vector<16x1xi32>,
    %c0_i32_7 = arith.constant 0 : i32
    %32 = arith.cmpi eq, %arg1, %c0_i32_7 : i32
    %33 = arith.extui %32 : i1 to i32
    %c0_i32_8 = arith.constant 0 : i32
    %34 = arith.cmpi ne, %33, %c0_i32_8 : i32
    scf.if %34 {
      %c0_9 = arith.constant 0 : index
      %c0_10 = arith.constant 0 : index
      %35 = vector.load %arg2[%c0_9, %c0_10] : memref<16x256xf32, #tpu.memory_space<vmem>>, vector<16x256xf32>
      %36 = vector.extract_strided_slice %35 {offsets = [0, 0], sizes = [16, 128], strides = [1, 1]} : vector<16x256xf32> to vector<16x128xf32>
      %37 = vector.extract_strided_slice %35 {offsets = [0, 128], sizes = [16, 128], strides = [1, 1]} : vector<16x256xf32> to vector<16x128xf32>
      %38 = arith.maximumf %36, %37 : vector<16x128xf32>
      %39 = vector.extract_strided_slice %38 {offsets = [0, 0], sizes = [16, 64], strides = [1, 1]} : vector<16x128xf32> to vector<16x64xf32>
      %40 = vector.extract_strided_slice %38 {offsets = [0, 64], sizes = [16, 64], strides = [1, 1]} : vector<16x128xf32> to vector<16x64xf32>
      %41 = arith.maximumf %39, %40 : vector<16x64xf32>
      %42 = vector.extract_strided_slice %41 {offsets = [0, 0], sizes = [16, 32], strides = [1, 1]} : vector<16x64xf32> to vector<16x32xf32>
      %43 = vector.extract_strided_slice %41 {offsets = [0, 32], sizes = [16, 32], strides = [1, 1]} : vector<16x64xf32> to vector<16x32xf32>
      %44 = arith.maximumf %42, %43 : vector<16x32xf32>
      %45 = vector.extract_strided_slice %44 {offsets = [0, 0], sizes = [16, 16], strides = [1, 1]} : vector<16x32xf32> to vector<16x16xf32>
      %46 = vector.extract_strided_slice %44 {offsets = [0, 16], sizes = [16, 16], strides = [1, 1]} : vector<16x32xf32> to vector<16x16xf32>
      %47 = arith.maximumf %45, %46 : vector<16x16xf32>
      %48 = tpu.concatenate %47, %47, %47, %47, %47, %47, %47, %47, %47, %47, %47, %47, %47, %47, %47, %47 in 1 : vector<16x16xf32>, vector<16x16xf32>, vector<16x16xf32>, vector<16x16xf32>, vector<16x16xf32>, vector<16x16xf32>, vector<16x16xf32>, vector<16x16xf32>, vector<16x16xf32>, vector<16x16xf32>, vector<16x16xf32>, vector<16x16xf32>, vector<16x16xf32>, vector<16x16xf32>, vector<16x16xf32>, vector<16x16xf32> -> vector<16x256xf32>
      %49 = arith.subf %35, %48 : vector<16x256xf32>
      %50 = math.exp %49 : vector<16x256xf32>
      %51 = tpu.iota {dimensions = array<i32: 0>} : vector<256x16xi32>
      %52 = tpu.iota {dimensions = array<i32: 1>} : vector<256x16xi32>
      %c16_i32 = arith.constant 16 : i32
      %c0_i32_11 = arith.constant 0 : i32
      %53 = arith.cmpi eq, %c16_i32, %c0_i32_11 : i32
      %c1_i32_12 = arith.constant 1 : i32
      %54 = arith.select %53, %c1_i32_12, %c16_i32 : i32
      %55 = vector.broadcast %54 : i32 to vector<256x16xi32>
      %56 = arith.remsi %51, %55 : vector<256x16xi32>
      %c0_i32_13 = arith.constant 0 : i32
      %57 = vector.broadcast %c0_i32_13 : i32 to vector<256x16xi32>
      %58 = arith.cmpi ne, %56, %57 : vector<256x16xi32>
      %c0_i32_14 = arith.constant 0 : i32
      %59 = vector.broadcast %c0_i32_14 : i32 to vector<256x16xi32>
      %60 = arith.cmpi slt, %56, %59 : vector<256x16xi32>
      %c0_i32_15 = arith.constant 0 : i32
      %61 = arith.cmpi slt, %54, %c0_i32_15 : i32
      %62 = vector.broadcast %61 : i1 to vector<256x16xi1>
      %63 = vector.broadcast %62 : vector<256x16xi1> to vector<256x16xi1>
      %64 = arith.xori %60, %63 : vector<256x16xi1>
      %65 = arith.andi %64, %58 : vector<256x16xi1>
      %66 = vector.broadcast %54 : i32 to vector<256x16xi32>
      %67 = arith.addi %56, %66 : vector<256x16xi32>
      %68 = arith.select %65, %67, %56 : vector<256x16xi1>, vector<256x16xi32>
      %69 = arith.cmpi eq, %68, %52 : vector<256x16xi32>
      %70 = arith.extui %69 : vector<256x16xi1> to vector<256x16xi32>
      %71 = arith.sitofp %70 : vector<256x16xi32> to vector<256x16xf32>
      %cst = arith.constant dense<0.000000e+00> : vector<16x16xf32>
      %72 = tpu.matmul %50, %71, %cst {dimension_numbers = #tpu.dot_dimension_numbers<[1], [0], [0], [1], [0, 0, 1, 1], [], []>} : vector<16x256xf32>, vector<256x16xf32>, vector<16x16xf32> -> vector<16x16xf32>
      %73 = vector.extract_strided_slice %35 {offsets = [0, 0], sizes = [16, 16], strides = [1, 1]} : vector<16x256xf32> to vector<16x16xf32>
      %74 = arith.subf %73, %47 : vector<16x16xf32>
      %75 = math.log %72 : vector<16x16xf32>
      %76 = arith.subf %74, %75 : vector<16x16xf32>
      %c0_16 = arith.constant 0 : index
      %c0_17 = arith.constant 0 : index
      %77 = vector.load %arg5[%c0_16, %c0_17] : memref<16x1xi32, #tpu.memory_space<vmem>>, vector<16x1xi32>
      %c3_i32 = arith.constant 3 : i32
      %78 = vector.broadcast %c3_i32 : i32 to vector<16x1xi32>
      %79 = arith.shli %77, %78 : vector<16x1xi32>
      %80 = vector.shape_cast %79 : vector<16x1xi32> to vector<16x1xi32>
      %81 = vector.broadcast %80 : vector<16x1xi32> to vector<16x16xi32>
      %82 = tpu.iota {dimensions = array<i32: 1>} : vector<16x16xi32>
      %c4_i32 = arith.constant 4 : i32
      %83 = vector.broadcast %c4_i32 : i32 to vector<16x16xi32>
      %c3_i32_18 = arith.constant 3 : i32
      %84 = vector.broadcast %c3_i32_18 : i32 to vector<16x16xi32>
      %85 = arith.subi %82, %84 : vector<16x16xi32>
      %c3_i32_19 = arith.constant 3 : i32
      %86 = vector.broadcast %c3_i32_19 : i32 to vector<16x16xi32>
      %87 = arith.addi %85, %86 : vector<16x16xi32>
      %88 = arith.shrsi %81, %87 : vector<16x16xi32>
      %c3_i32_20 = arith.constant 3 : i32
      %89 = vector.broadcast %c3_i32_20 : i32 to vector<16x16xi32>
      %90 = arith.addi %82, %89 : vector<16x16xi32>
      %c3_i32_21 = arith.constant 3 : i32
      %91 = vector.broadcast %c3_i32_21 : i32 to vector<16x16xi32>
      %92 = arith.addi %90, %91 : vector<16x16xi32>
      %93 = arith.shrsi %81, %92 : vector<16x16xi32>
      %94 = arith.ori %88, %93 : vector<16x16xi32>
      %c1_i32_22 = arith.constant 1 : i32
      %95 = vector.broadcast %c1_i32_22 : i32 to vector<16x16xi32>
      %96 = arith.andi %94, %95 : vector<16x16xi32>
      %c0_i32_23 = arith.constant 0 : i32
      %97 = vector.broadcast %c0_i32_23 : i32 to vector<16x16xi32>
      %98 = arith.cmpi sgt, %96, %97 : vector<16x16xi32>
      %c3_i32_24 = arith.constant 3 : i32
      %99 = vector.broadcast %c3_i32_24 : i32 to vector<16x16xi32>
      %100 = arith.select %98, %99, %83 : vector<16x16xi1>, vector<16x16xi32>
      %c2_i32 = arith.constant 2 : i32
      %101 = vector.broadcast %c2_i32 : i32 to vector<16x16xi32>
      %102 = arith.subi %82, %101 : vector<16x16xi32>
      %c3_i32_25 = arith.constant 3 : i32
      %103 = vector.broadcast %c3_i32_25 : i32 to vector<16x16xi32>
      %104 = arith.addi %102, %103 : vector<16x16xi32>
      %105 = arith.shrsi %81, %104 : vector<16x16xi32>
      %c2_i32_26 = arith.constant 2 : i32
      %106 = vector.broadcast %c2_i32_26 : i32 to vector<16x16xi32>
      %107 = arith.addi %82, %106 : vector<16x16xi32>
      %c3_i32_27 = arith.constant 3 : i32
      %108 = vector.broadcast %c3_i32_27 : i32 to vector<16x16xi32>
      %109 = arith.addi %107, %108 : vector<16x16xi32>
      %110 = arith.shrsi %81, %109 : vector<16x16xi32>
      %111 = arith.ori %105, %110 : vector<16x16xi32>
      %c1_i32_28 = arith.constant 1 : i32
      %112 = vector.broadcast %c1_i32_28 : i32 to vector<16x16xi32>
      %113 = arith.andi %111, %112 : vector<16x16xi32>
      %c0_i32_29 = arith.constant 0 : i32
      %114 = vector.broadcast %c0_i32_29 : i32 to vector<16x16xi32>
      %115 = arith.cmpi sgt, %113, %114 : vector<16x16xi32>
      %c2_i32_30 = arith.constant 2 : i32
      %116 = vector.broadcast %c2_i32_30 : i32 to vector<16x16xi32>
      %117 = arith.select %115, %116, %100 : vector<16x16xi1>, vector<16x16xi32>
      %c1_i32_31 = arith.constant 1 : i32
      %118 = vector.broadcast %c1_i32_31 : i32 to vector<16x16xi32>
      %119 = arith.subi %82, %118 : vector<16x16xi32>
      %c3_i32_32 = arith.constant 3 : i32
      %120 = vector.broadcast %c3_i32_32 : i32 to vector<16x16xi32>
      %121 = arith.addi %119, %120 : vector<16x16xi32>
      %122 = arith.shrsi %81, %121 : vector<16x16xi32>
      %c1_i32_33 = arith.constant 1 : i32
      %123 = vector.broadcast %c1_i32_33 : i32 to vector<16x16xi32>
      %124 = arith.addi %82, %123 : vector<16x16xi32>
      %c3_i32_34 = arith.constant 3 : i32
      %125 = vector.broadcast %c3_i32_34 : i32 to vector<16x16xi32>
      %126 = arith.addi %124, %125 : vector<16x16xi32>
      %127 = arith.shrsi %81, %126 : vector<16x16xi32>
      %128 = arith.ori %122, %127 : vector<16x16xi32>
      %c1_i32_35 = arith.constant 1 : i32
      %129 = vector.broadcast %c1_i32_35 : i32 to vector<16x16xi32>
      %130 = arith.andi %128, %129 : vector<16x16xi32>
      %c0_i32_36 = arith.constant 0 : i32
      %131 = vector.broadcast %c0_i32_36 : i32 to vector<16x16xi32>
      %132 = arith.cmpi sgt, %130, %131 : vector<16x16xi32>
      %c1_i32_37 = arith.constant 1 : i32
      %133 = vector.broadcast %c1_i32_37 : i32 to vector<16x16xi32>
      %134 = arith.select %132, %133, %117 : vector<16x16xi1>, vector<16x16xi32>
      %c0_i32_38 = arith.constant 0 : i32
      %135 = vector.broadcast %c0_i32_38 : i32 to vector<16x16xi32>
      %136 = arith.subi %82, %135 : vector<16x16xi32>
      %c3_i32_39 = arith.constant 3 : i32
      %137 = vector.broadcast %c3_i32_39 : i32 to vector<16x16xi32>
      %138 = arith.addi %136, %137 : vector<16x16xi32>
      %139 = arith.shrsi %81, %138 : vector<16x16xi32>
      %c0_i32_40 = arith.constant 0 : i32
      %140 = vector.broadcast %c0_i32_40 : i32 to vector<16x16xi32>
      %141 = arith.addi %82, %140 : vector<16x16xi32>
      %c3_i32_41 = arith.constant 3 : i32
      %142 = vector.broadcast %c3_i32_41 : i32 to vector<16x16xi32>
      %143 = arith.addi %141, %142 : vector<16x16xi32>
      %144 = arith.shrsi %81, %143 : vector<16x16xi32>
      %145 = arith.ori %139, %144 : vector<16x16xi32>
      %c1_i32_42 = arith.constant 1 : i32
      %146 = vector.broadcast %c1_i32_42 : i32 to vector<16x16xi32>
      %147 = arith.andi %145, %146 : vector<16x16xi32>
      %c0_i32_43 = arith.constant 0 : i32
      %148 = vector.broadcast %c0_i32_43 : i32 to vector<16x16xi32>
      %149 = arith.cmpi sgt, %147, %148 : vector<16x16xi32>
      %c0_i32_44 = arith.constant 0 : i32
      %150 = vector.broadcast %c0_i32_44 : i32 to vector<16x16xi32>
      %151 = arith.select %149, %150, %134 : vector<16x16xi1>, vector<16x16xi32>
      %152 = arith.sitofp %151 : vector<16x16xi32> to vector<16x16xf32>
      %c3_i32_45 = arith.constant 3 : i32
      %153 = vector.broadcast %c3_i32_45 : i32 to vector<16x16xi32>
      %154 = arith.cmpi sle, %151, %153 : vector<16x16xi32>
      %cst_46 = arith.constant -5.000000e-01 : f32
      %155 = vector.broadcast %cst_46 : f32 to vector<16x16xf32>
      %156 = arith.mulf %155, %152 : vector<16x16xf32>
      %157 = arith.mulf %156, %152 : vector<16x16xf32>
      %158 = math.exp %157 : vector<16x16xf32>
      %cst_47 = arith.constant 0.000000e+00 : f32
      %159 = vector.broadcast %cst_47 : f32 to vector<16x16xf32>
      %160 = arith.select %154, %158, %159 : vector<16x16xi1>, vector<16x16xf32>
      %161 = arith.mulf %160, %76 : vector<16x16xf32>
      %cst_48 = arith.constant dense<0.000000e+00> : vector<16xf32>
      %162 = vector.multi_reduction <add>, %161, %cst_48 [1] : vector<16x16xf32> to vector<16xf32>
      %163 = vector.shape_cast %162 : vector<16xf32> to vector<16x1xf32>
      %cst_49 = arith.constant 0.000000e+00 : f32
      %164 = vector.broadcast %cst_49 : f32 to vector<16x1xf32>
      %165 = arith.subf %164, %163 : vector<16x1xf32>
      %c0_50 = arith.constant 0 : index
      %c0_51 = arith.constant 0 : index
      %166 = vector.load %arg4[%c0_50, %c0_51] : memref<16x1xf32, #tpu.memory_space<vmem>>, vector<16x1xf32>
      tpu.vector_store %arg4[%c0_50, %c0_51], %165 {strides = array<i32>} : memref<16x1xf32, #tpu.memory_space<vmem>>, vector<16x1xf32>,
    } else {
    }
    return
  }
  func.func @transform_0(%arg0: i32, %arg1: i32) -> (i32, i32) {
    %c0_i32 = arith.constant 0 : i32
    %c0_i32_0 = arith.constant 0 : i32
    return %arg0, %c0_i32 : i32, i32
  }
  func.func @transform_1(%arg0: i32, %arg1: i32) -> (i32, i32) {
    %c0_i32 = arith.constant 0 : i32
    return %arg0, %arg1 : i32, i32
  }
  func.func @transform_2(%arg0: i32, %arg1: i32) -> (i32, i32) {
    %c0_i32 = arith.constant 0 : i32
    %c0_i32_0 = arith.constant 0 : i32
    return %arg0, %c0_i32 : i32, i32
  }
}

</mosaic_0001>

<llo_original>
// kernel: tpu_custom_call.1
$region0: #{tpu_custom_call.1}
  #allocation0 [shape = 'u32[]', space=smem, size = 0x4, offset = 0x4, fixed_abs, tag = 'smem constant byte address 0x4 - core index']
  #allocation1 [shape = 'u32[72,128]{1,0:T(1,128)}', space=vmem, size = 0x9000, scoped, tag = 'internal scratch']
  #allocation2 [shape = 's32[16,1]{1,0:T(8,128)}', space=vmem, size = 0x2000, scoped, tag = 'scratch operand']
  %s0 = inlined_call_operand.hbm [shape: f32[16,256], index: 0, kind: input, shape index: {}]
  %s1 = inlined_call_operand.hbm [shape: s8[16,64], index: 1, kind: input, shape index: {}]
  %s2 = inlined_call_operand.vmem [shape: f32[16,1], index: 2, kind: output, shape index: {}]
  %s3 = sld [smem:[#allocation0]]
  $region34: #{tpu_custom_call.1} parent=0
    _
  %s5 = ssub.s32 1, %s3
  %s6 = scalar_select 0, %s5, %s3
  $region1: #{tpu_custom_call.1} parent=0
    #allocation3 [shape = 'u8[16384]{0}', space=vmem, size = 0x4000, scoped, tag = 'input window, operand 0, single buffered']
    #allocation4 [shape = 's32[1]{0}', space=sflag, size = 0x4, scoped, tag = 'scoped memory for tpu_custom_call.1']
    #allocation5 [shape = 'u8[2048]{0}', space=vmem, size = 0x800, scoped, tag = 'input window, operand 1, single buffered']
    #allocation6 [shape = 's32[1]{0}', space=sflag, size = 0x4, scoped, tag = 'scoped memory for tpu_custom_call.1']
    %7 = vsyncpa [#allocation4], 0
    %8 = vsyncpa [#allocation6], 0
    // Predicated region
    $region2: #{tpu_custom_call.1} parent=1 // pred_check
      _
    $region3: #{tpu_custom_call.1} parent=1 // pred_check_branch
      %10 = sbr.rel (0) target = $region5
    $region4: #{tpu_custom_call.1} parent=1 // pred_region
      %12 = vsyncadd [#allocation4], 0
      %s13 = sshll.u32 %s0, 4
      %s14 = int_to_ptr.hbm [resolvable:$true] %s13
      %s15 = sshll.u32 [#allocation3], 4
      %s16 = int_to_ptr.vmem [resolvable:$true] %s15
      %21 = dma.hbm_to_vmem [thread:$0]  %s14, 512, %s16, [#allocation4], 256, 256, 16
    $region5: #{tpu_custom_call.1} parent=1 // pred_fallthru
      _
    // Predicated region
    $region6: #{tpu_custom_call.1} parent=1 // pred_check
      _
    $region7: #{tpu_custom_call.1} parent=1 // pred_check_branch
      %23 = sbr.rel (0) target = $region9
    $region8: #{tpu_custom_call.1} parent=1 // pred_region
      %25 = vsyncadd [#allocation6], 0
      %s26 = sshll.u32 %s1, 4
      %s27 = int_to_ptr.hbm [resolvable:$true] %s26
      %s28 = sshll.u32 [#allocation5], 4
      %s29 = int_to_ptr.vmem [resolvable:$true] %s28
      %34 = dma.hbm_to_vmem [thread:$0]  %s27, 64, %s29, [#allocation6], 32, 32, 2
    $region9: #{tpu_custom_call.1} parent=1 // pred_fallthru
      _
    // Predicated region
    $region10: #{tpu_custom_call.1} parent=1 // pred_check
      _
    $region11: #{tpu_custom_call.1} parent=1 // pred_check_branch
      %36 = sbr.rel (0) target = $region13
    $region12: #{tpu_custom_call.1} parent=1 // pred_region
      %38 = dma.done [#allocation4], 512
    $region13: #{tpu_custom_call.1} parent=1 // pred_fallthru
      _
    // Predicated region
    $region14: #{tpu_custom_call.1} parent=1 // pred_check
      _
    $region15: #{tpu_custom_call.1} parent=1 // pred_check_branch
      %40 = sbr.rel (0) target = $region17
    $region16: #{tpu_custom_call.1} parent=1 // pred_region
      %42 = dma.done [#allocation6], 64
    $region17: #{tpu_custom_call.1} parent=1 // pred_fallthru
      _
    %p43 = scmp.eq.s32.totalorder 0, 0
    // Predicated region
    $region18: #{tpu_custom_call.1} parent=1 // pred_check
      %p44 = pneg %p43
    $region19: #{tpu_custom_call.1} parent=1 // pred_check_branch
      %46 = sbr.rel (%p44) target = $region21
    $region20: #{tpu_custom_call.1} parent=1 // pred_region
      %vm47 = vcmask 7168
      %48 = vst.msk [vmem:[#allocation2] sm:$0xff] %vm47, 0
      %49 = vst.msk [vmem:[#allocation2 + $0x8] sm:$0xff] %vm47, 0
    $region21: #{tpu_custom_call.1} parent=1 // pred_fallthru
      _
    %v50 = vld [vmem:[#allocation5] sm:$0x3]
    %v51 = vld [vmem:[#allocation5 + $0x2] sm:$0x3]
    %v52 = vunpack.c.0.s8 %v50
    %v53 = vunpack.c.0.s8 %v51
    %vm54 = vcmp.gt.s32.totalorder %v52, 0
    %v55 = vsel %vm54, %v52, 0
    %vm56 = vcmp.gt.s32.totalorder %v53, 0
    %v57 = vsel %vm56, %v53, 0
    %vm58 = vcmp.lt.s32.totalorder %v55, 15
    %v59 = vsel %vm58, %v55, 15
    %vm60 = vcmp.lt.s32.totalorder %v57, 15
    %v61 = vsel %vm60, %v57, 15
    %v62 = vshll.u32 1, %v59
    %v63 = vshll.u32 1, %v61
    %v64 = vld [vmem:[#allocation2] sm:$0xff]
    %v65 = vld [vmem:[#allocation2 + $0x8] sm:$0xff]
    %66 = vrot.lane.b32.xlu0 %v62, 96
    %v67 = vpop.permute.xlu0 %66
    %68 = vrot.lane.b32.xlu0 %v63, 96
    %v69 = vpop.permute.xlu0 %68
    %v70 = vor.u32 %v62, %v67
    %v71 = vor.u32 %v63, %v69
    %72 = vrot.lane.b32.xlu0 %v70, 112
    %v73 = vpop.permute.xlu0 %72
    %74 = vrot.lane.b32.xlu0 %v71, 112
    %v75 = vpop.permute.xlu0 %74
    %v76 = vor.u32 %v70, %v73
    %v77 = vor.u32 %v71, %v75
    %78 = vrot.lane.b32.xlu0 %v76, 120
    %v79 = vpop.permute.xlu0 %78
    %80 = vrot.lane.b32.xlu0 %v77, 120
    %v81 = vpop.permute.xlu0 %80
    %v82 = vor.u32 %v76, %v79
    %v83 = vor.u32 %v77, %v81
    %84 = vrot.lane.b32.xlu0 %v82, 124
    %v85 = vpop.permute.xlu0 %84
    %86 = vrot.lane.b32.xlu0 %v83, 124
    %v87 = vpop.permute.xlu0 %86
    %v88 = vor.u32 %v82, %v85
    %v89 = vor.u32 %v83, %v87
    %90 = vrot.lane.b32.xlu0 %v88, 126
    %v91 = vpop.permute.xlu0 %90
    %92 = vrot.lane.b32.xlu0 %v89, 126
    %v93 = vpop.permute.xlu0 %92
    %v94 = vor.u32 %v88, %v91
    %v95 = vor.u32 %v89, %v93
    %96 = vrot.lane.b32.xlu0 %v94, 127
    %v97 = vpop.permute.xlu0 %96
    %98 = vrot.lane.b32.xlu0 %v95, 127
    %v99 = vpop.permute.xlu0 %98
    %v100 = vor.u32 %v94, %v97
    %v101 = vor.u32 %v95, %v99
    %v102 = vor.u32 %v64, %v100
    %v103 = vor.u32 %v65, %v101
    %vm104 = vcmask 7168
    %105 = vst.msk [vmem:[#allocation2] sm:$0xff] %vm104, %v102
    %106 = vst.msk [vmem:[#allocation2 + $0x8] sm:$0xff] %vm104, %v103
    // Predicated region
    $region22: #{tpu_custom_call.1} parent=1 // pred_check
      %p107 = pneg %p43
    $region23: #{tpu_custom_call.1} parent=1 // pred_check_branch
      %109 = sbr.rel (%p107) target = $region25
    $region24: #{tpu_custom_call.1} parent=1 // pred_region
      %v110 = vld [vmem:[#allocation3] sm:$0xff]
      %v111 = vld [vmem:[#allocation3 + $0x8] sm:$0xff]
      %v112 = vld [vmem:[#allocation3 + $0x10] sm:$0xff]
      %v113 = vld [vmem:[#allocation3 + $0x18] sm:$0xff]
      %v114 = vmax.f32 %v110, %v111
      %v115 = vmax.f32 %v112, %v113
      %118 = vrot.lane.b32.xlu0 %v114, 64
      %v119 = vpop.permute.xlu0 %118
      %120 = vrot.lane.b32.xlu0 %v115, 64
      %v121 = vpop.permute.xlu0 %120
      %v124 = vmax.f32 %v114, %v119
      %v125 = vmax.f32 %v115, %v121
      %128 = vrot.lane.b32.xlu0 %v124, 96
      %v129 = vpop.permute.xlu0 %128
      %130 = vrot.lane.b32.xlu0 %v125, 96
      %v131 = vpop.permute.xlu0 %130
      %v134 = vmax.f32 %v124, %v129
      %v135 = vmax.f32 %v125, %v131
      %138 = vrot.lane.b32.xlu0 %v134, 112
      %v139 = vpop.permute.xlu0 %138
      %140 = vrot.lane.b32.xlu0 %v135, 112
      %v141 = vpop.permute.xlu0 %140
      %v144 = vmax.f32 %v134, %v139
      %v145 = vmax.f32 %v135, %v141
      %148 = vrot.lane.b32.xlu0 %v144, 16
      %v149 = vpop.permute.xlu0 %148
      %150 = vrot.lane.b32.xlu0 %v145, 16
      %v151 = vpop.permute.xlu0 %150
      %154 = vrot.lane.b32.xlu0 %v144, 32
      %v155 = vpop.permute.xlu0 %154
      %156 = vrot.lane.b32.xlu0 %v145, 32
      %v157 = vpop.permute.xlu0 %156
      %160 = vrot.lane.b32.xlu0 %v144, 48
      %v161 = vpop.permute.xlu0 %160
      %162 = vrot.lane.b32.xlu0 %v145, 48
      %v163 = vpop.permute.xlu0 %162
      %166 = vrot.lane.b32.xlu0 %v144, 64
      %v167 = vpop.permute.xlu0 %166
      %168 = vrot.lane.b32.xlu0 %v145, 64
      %v169 = vpop.permute.xlu0 %168
      %172 = vrot.lane.b32.xlu0 %v144, 80
      %v173 = vpop.permute.xlu0 %172
      %174 = vrot.lane.b32.xlu0 %v145, 80
      %v175 = vpop.permute.xlu0 %174
      %178 = vrot.lane.b32.xlu0 %v144, 96
      %v179 = vpop.permute.xlu0 %178
      %180 = vrot.lane.b32.xlu0 %v145, 96
      %v181 = vpop.permute.xlu0 %180
      %184 = vrot.lane.b32.xlu0 %v144, 112
      %v185 = vpop.permute.xlu0 %184
      %186 = vrot.lane.b32.xlu0 %v145, 112
      %v187 = vpop.permute.xlu0 %186
      %vm190 = vcmask 130048
      %v191 = vsel %vm190, %v144, %v149
      %v192 = vsel %vm190, %v145, %v151
      %vm193 = vcmask 261120
      %v194 = vsel %vm193, %v191, %v155
      %v195 = vsel %vm193, %v192, %v157
      %vm196 = vcmask 392192
      %v197 = vsel %vm196, %v194, %v161
      %v198 = vsel %vm196, %v195, %v163
      %vm199 = vcmask 523264
      %v200 = vsel %vm199, %v197, %v167
      %v201 = vsel %vm199, %v198, %v169
      %vm202 = vcmask 654336
      %v203 = vsel %vm202, %v200, %v173
      %v204 = vsel %vm202, %v201, %v175
      %vm205 = vcmask 785408
      %v206 = vsel %vm205, %v203, %v179
      %v207 = vsel %vm205, %v204, %v181
      %vm208 = vcmask 916480
      %v209 = vsel %vm208, %v206, %v185
      %v210 = vsel %vm208, %v207, %v187
      %v211 = vsub.f32 %v110, %v209
      %v212 = vsub.f32 %v111, %v209
      %v213 = vsub.f32 %v112, %v210
      %v214 = vsub.f32 %v113, %v210
      %v215 = vmul.f32 %v211, 1.442695
      %v216 = vpow.pop %v215
      %v217 = vmul.f32 %v212, 1.442695
      %v218 = vpow.pop %v217
      %v219 = vmul.f32 %v213, 1.442695
      %v220 = vpow.pop %v219
      %v221 = vmul.f32 %v214, 1.442695
      %v222 = vpow.pop %v221
      %v223 = vlaneseq
      %v224 = vshrl.u32 %v223, 7
      %v225 = vadd.s32 %v224, 8
      %v226 = vadd.s32 %v224, 16
      %v227 = vadd.s32 %v224, 24
      %v228 = vadd.s32 %v224, 32
      %v229 = vadd.s32 %v224, 40
      %v230 = vadd.s32 %v224, 48
      %v231 = vadd.s32 %v224, 56
      %v232 = vadd.s32 %v224, 64
      %v233 = vadd.s32 %v224, 72
      %v234 = vadd.s32 %v224, 80
      %v235 = vadd.s32 %v224, 88
      %v236 = vadd.s32 %v224, 96
      %v237 = vadd.s32 %v224, 104
      %v238 = vadd.s32 %v224, 112
      %v239 = vadd.s32 %v224, 120
      %v240 = vadd.s32 %v224, 128
      %v241 = vadd.s32 %v224, 136
      %v242 = vadd.s32 %v224, 144
      %v243 = vadd.s32 %v224, 152
      %v244 = vadd.s32 %v224, 160
      %v245 = vadd.s32 %v224, 168
      %v246 = vadd.s32 %v224, 176
      %v247 = vadd.s32 %v224, 184
      %v248 = vadd.s32 %v224, 192
      %v249 = vadd.s32 %v224, 200
      %v250 = vadd.s32 %v224, 208
      %v251 = vadd.s32 %v224, 216
      %v252 = vadd.s32 %v224, 224
      %v253 = vadd.s32 %v224, 232
      %v254 = vadd.s32 %v224, 240
      %v255 = vadd.s32 %v224, 248
      %v256 = vlaneseq
      %v257 = vand.u32 %v256, 127
      %vm258 = vcmp.lt.s32.totalorder %v224, 0
      %v259 = vsub.s32 0, %v224
      %v260 = vsel %vm258, %v259, %v224
      %v261 = vshrl.u32 %v260, 4
      %v262 = vand.u32 %v260, 15
      %v263 = vsub.s32 0, %v262
      %v264 = vsel %vm258, %v263, %v262
      %vm265 = vcmp.lt.s32.totalorder %v225, 0
      %v266 = vsub.s32 0, %v225
      %v267 = vsel %vm265, %v266, %v225
      %v268 = vshrl.u32 %v267, 4
      %v269 = vand.u32 %v267, 15
      %v270 = vsub.s32 0, %v269
      %v271 = vsel %vm265, %v270, %v269
      %vm272 = vcmp.lt.s32.totalorder %v226, 0
      %v273 = vsub.s32 0, %v226
      %v274 = vsel %vm272, %v273, %v226
      %v275 = vshrl.u32 %v274, 4
      %v276 = vand.u32 %v274, 15
      %v277 = vsub.s32 0, %v276
      %v278 = vsel %vm272, %v277, %v276
      %vm279 = vcmp.lt.s32.totalorder %v227, 0
      %v280 = vsub.s32 0, %v227
      %v281 = vsel %vm279, %v280, %v227
      %v282 = vshrl.u32 %v281, 4
      %v283 = vand.u32 %v281, 15
      %v284 = vsub.s32 0, %v283
      %v285 = vsel %vm279, %v284, %v283
      %vm286 = vcmp.lt.s32.totalorder %v228, 0
      %v287 = vsub.s32 0, %v228
      %v288 = vsel %vm286, %v287, %v228
      %v289 = vshrl.u32 %v288, 4
      %v290 = vand.u32 %v288, 15
      %v291 = vsub.s32 0, %v290
      %v292 = vsel %vm286, %v291, %v290
      %vm293 = vcmp.lt.s32.totalorder %v229, 0
      %v294 = vsub.s32 0, %v229
      %v295 = vsel %vm293, %v294, %v229
      %v296 = vshrl.u32 %v295, 4
      %v297 = vand.u32 %v295, 15
      %v298 = vsub.s32 0, %v297
      %v299 = vsel %vm293, %v298, %v297
      %vm300 = vcmp.lt.s32.totalorder %v230, 0
      %v301 = vsub.s32 0, %v230
      %v302 = vsel %vm300, %v301, %v230
      %v303 = vshrl.u32 %v302, 4
      %v304 = vand.u32 %v302, 15
      %v305 = vsub.s32 0, %v304
      %v306 = vsel %vm300, %v305, %v304
      %vm307 = vcmp.lt.s32.totalorder %v231, 0
      %v308 = vsub.s32 0, %v231
      %v309 = vsel %vm307, %v308, %v231
      %v310 = vshrl.u32 %v309, 4
      %v311 = vand.u32 %v309, 15
      %v312 = vsub.s32 0, %v311
      %v313 = vsel %vm307, %v312, %v311
      %vm314 = vcmp.lt.s32.totalorder %v232, 0
      %v315 = vsub.s32 0, %v232
      %v316 = vsel %vm314, %v315, %v232
      %v317 = vshrl.u32 %v316, 4
      %v318 = vand.u32 %v316, 15
      %v319 = vsub.s32 0, %v318
      %v320 = vsel %vm314, %v319, %v318
      %vm321 = vcmp.lt.s32.totalorder %v233, 0
      %v322 = vsub.s32 0, %v233
      %v323 = vsel %vm321, %v322, %v233
      %v324 = vshrl.u32 %v323, 4
      %v325 = vand.u32 %v323, 15
      %v326 = vsub.s32 0, %v325
      %v327 = vsel %vm321, %v326, %v325
      %vm328 = vcmp.lt.s32.totalorder %v234, 0
      %v329 = vsub.s32 0, %v234
      %v330 = vsel %vm328, %v329, %v234
      %v331 = vshrl.u32 %v330, 4
      %v332 = vand.u32 %v330, 15
      %v333 = vsub.s32 0, %v332
      %v334 = vsel %vm328, %v333, %v332
      %vm335 = vcmp.lt.s32.totalorder %v235, 0
      %v336 = vsub.s32 0, %v235
      %v337 = vsel %vm335, %v336, %v235
      %v338 = vshrl.u32 %v337, 4
      %v339 = vand.u32 %v337, 15
      %v340 = vsub.s32 0, %v339
      %v341 = vsel %vm335, %v340, %v339
      %vm342 = vcmp.lt.s32.totalorder %v236, 0
      %v343 = vsub.s32 0, %v236
      %v344 = vsel %vm342, %v343, %v236
      %v345 = vshrl.u32 %v344, 4
      %v346 = vand.u32 %v344, 15
      %v347 = vsub.s32 0, %v346
      %v348 = vsel %vm342, %v347, %v346
      %vm349 = vcmp.lt.s32.totalorder %v237, 0
      %v350 = vsub.s32 0, %v237
      %v351 = vsel %vm349, %v350, %v237
      %v352 = vshrl.u32 %v351, 4
      %v353 = vand.u32 %v351, 15
      %v354 = vsub.s32 0, %v353
      %v355 = vsel %vm349, %v354, %v353
      %vm356 = vcmp.lt.s32.totalorder %v238, 0
      %v357 = vsub.s32 0, %v238
      %v358 = vsel %vm356, %v357, %v238
      %v359 = vshrl.u32 %v358, 4
      %v360 = vand.u32 %v358, 15
      %v361 = vsub.s32 0, %v360
      %v362 = vsel %vm356, %v361, %v360
      %vm363 = vcmp.lt.s32.totalorder %v239, 0
      %v364 = vsub.s32 0, %v239
      %v365 = vsel %vm363, %v364, %v239
      %v366 = vshrl.u32 %v365, 4
      %v367 = vand.u32 %v365, 15
      %v368 = vsub.s32 0, %v367
      %v369 = vsel %vm363, %v368, %v367
      %vm370 = vcmp.lt.s32.totalorder %v240, 0
      %v371 = vsub.s32 0, %v240
      %v372 = vsel %vm370, %v371, %v240
      %v373 = vshrl.u32 %v372, 4
      %v374 = vand.u32 %v372, 15
      %v375 = vsub.s32 0, %v374
      %v376 = vsel %vm370, %v375, %v374
      %vm377 = vcmp.lt.s32.totalorder %v241, 0
      %v378 = vsub.s32 0, %v241
      %v379 = vsel %vm377, %v378, %v241
      %v380 = vshrl.u32 %v379, 4
      %v381 = vand.u32 %v379, 15
      %v382 = vsub.s32 0, %v381
      %v383 = vsel %vm377, %v382, %v381
      %vm384 = vcmp.lt.s32.totalorder %v242, 0
      %v385 = vsub.s32 0, %v242
      %v386 = vsel %vm384, %v385, %v242
      %v387 = vshrl.u32 %v386, 4
      %v388 = vand.u32 %v386, 15
      %v389 = vsub.s32 0, %v388
      %v390 = vsel %vm384, %v389, %v388
      %vm391 = vcmp.lt.s32.totalorder %v243, 0
      %v392 = vsub.s32 0, %v243
      %v393 = vsel %vm391, %v392, %v243
      %v394 = vshrl.u32 %v393, 4
      %v395 = vand.u32 %v393, 15
      %v396 = vsub.s32 0, %v395
      %v397 = vsel %vm391, %v396, %v395
      %vm398 = vcmp.lt.s32.totalorder %v244, 0
      %v399 = vsub.s32 0, %v244
      %v400 = vsel %vm398, %v399, %v244
      %v401 = vshrl.u32 %v400, 4
      %v402 = vand.u32 %v400, 15
      %v403 = vsub.s32 0, %v402
      %v404 = vsel %vm398, %v403, %v402
      %vm405 = vcmp.lt.s32.totalorder %v245, 0
      %v406 = vsub.s32 0, %v245
      %v407 = vsel %vm405, %v406, %v245
      %v408 = vshrl.u32 %v407, 4
      %v409 = vand.u32 %v407, 15
      %v410 = vsub.s32 0, %v409
      %v411 = vsel %vm405, %v410, %v409
      %vm412 = vcmp.lt.s32.totalorder %v246, 0
      %v413 = vsub.s32 0, %v246
      %v414 = vsel %vm412, %v413, %v246
      %v415 = vshrl.u32 %v414, 4
      %v416 = vand.u32 %v414, 15
      %v417 = vsub.s32 0, %v416
      %v418 = vsel %vm412, %v417, %v416
      %vm419 = vcmp.lt.s32.totalorder %v247, 0
      %v420 = vsub.s32 0, %v247
      %v421 = vsel %vm419, %v420, %v247
      %v422 = vshrl.u32 %v421, 4
      %v423 = vand.u32 %v421, 15
      %v424 = vsub.s32 0, %v423
      %v425 = vsel %vm419, %v424, %v423
      %vm426 = vcmp.lt.s32.totalorder %v248, 0
      %v427 = vsub.s32 0, %v248
      %v428 = vsel %vm426, %v427, %v248
      %v429 = vshrl.u32 %v428, 4
      %v430 = vand.u32 %v428, 15
      %v431 = vsub.s32 0, %v430
      %v432 = vsel %vm426, %v431, %v430
      %vm433 = vcmp.lt.s32.totalorder %v249, 0
      %v434 = vsub.s32 0, %v249
      %v435 = vsel %vm433, %v434, %v249
      %v436 = vshrl.u32 %v435, 4
      %v437 = vand.u32 %v435, 15
      %v438 = vsub.s32 0, %v437
      %v439 = vsel %vm433, %v438, %v437
      %vm440 = vcmp.lt.s32.totalorder %v250, 0
      %v441 = vsub.s32 0, %v250
      %v442 = vsel %vm440, %v441, %v250
      %v443 = vshrl.u32 %v442, 4
      %v444 = vand.u32 %v442, 15
      %v445 = vsub.s32 0, %v444
      %v446 = vsel %vm440, %v445, %v444
      %vm447 = vcmp.lt.s32.totalorder %v251, 0
      %v448 = vsub.s32 0, %v251
      %v449 = vsel %vm447, %v448, %v251
      %v450 = vshrl.u32 %v449, 4
      %v451 = vand.u32 %v449, 15
      %v452 = vsub.s32 0, %v451
      %v453 = vsel %vm447, %v452, %v451
      %vm454 = vcmp.lt.s32.totalorder %v252, 0
      %v455 = vsub.s32 0, %v252
      %v456 = vsel %vm454, %v455, %v252
      %v457 = vshrl.u32 %v456, 4
      %v458 = vand.u32 %v456, 15
      %v459 = vsub.s32 0, %v458
      %v460 = vsel %vm454, %v459, %v458
      %vm461 = vcmp.lt.s32.totalorder %v253, 0
      %v462 = vsub.s32 0, %v253
      %v463 = vsel %vm461, %v462, %v253
      %v464 = vshrl.u32 %v463, 4
      %v465 = vand.u32 %v463, 15
      %v466 = vsub.s32 0, %v465
      %v467 = vsel %vm461, %v466, %v465
      %vm468 = vcmp.lt.s32.totalorder %v254, 0
      %v469 = vsub.s32 0, %v254
      %v470 = vsel %vm468, %v469, %v254
      %v471 = vshrl.u32 %v470, 4
      %v472 = vand.u32 %v470, 15
      %v473 = vsub.s32 0, %v472
      %v474 = vsel %vm468, %v473, %v472
      %vm475 = vcmp.lt.s32.totalorder %v255, 0
      %v476 = vsub.s32 0, %v255
      %v477 = vsel %vm475, %v476, %v255
      %v478 = vshrl.u32 %v477, 4
      %v479 = vand.u32 %v477, 15
      %v480 = vsub.s32 0, %v479
      %v481 = vsel %vm475, %v480, %v479
      %vm482 = vcmp.ne.s32.totalorder %v264, 0
      %vm483 = vcmp.ne.s32.totalorder %v271, 0
      %vm484 = vcmp.ne.s32.totalorder %v278, 0
      %vm485 = vcmp.ne.s32.totalorder %v285, 0
      %vm486 = vcmp.ne.s32.totalorder %v292, 0
      %vm487 = vcmp.ne.s32.totalorder %v299, 0
      %vm488 = vcmp.ne.s32.totalorder %v306, 0
      %vm489 = vcmp.ne.s32.totalorder %v313, 0
      %vm490 = vcmp.ne.s32.totalorder %v320, 0
      %vm491 = vcmp.ne.s32.totalorder %v327, 0
      %vm492 = vcmp.ne.s32.totalorder %v334, 0
      %vm493 = vcmp.ne.s32.totalorder %v341, 0
      %vm494 = vcmp.ne.s32.totalorder %v348, 0
      %vm495 = vcmp.ne.s32.totalorder %v355, 0
      %vm496 = vcmp.ne.s32.totalorder %v362, 0
      %vm497 = vcmp.ne.s32.totalorder %v369, 0
      %vm498 = vcmp.ne.s32.totalorder %v376, 0
      %vm499 = vcmp.ne.s32.totalorder %v383, 0
      %vm500 = vcmp.ne.s32.totalorder %v390, 0
      %vm501 = vcmp.ne.s32.totalorder %v397, 0
      %vm502 = vcmp.ne.s32.totalorder %v404, 0
      %vm503 = vcmp.ne.s32.totalorder %v411, 0
      %vm504 = vcmp.ne.s32.totalorder %v418, 0
      %vm505 = vcmp.ne.s32.totalorder %v425, 0
      %vm506 = vcmp.ne.s32.totalorder %v432, 0
      %vm507 = vcmp.ne.s32.totalorder %v439, 0
      %vm508 = vcmp.ne.s32.totalorder %v446, 0
      %vm509 = vcmp.ne.s32.totalorder %v453, 0
      %vm510 = vcmp.ne.s32.totalorder %v460, 0
      %vm511 = vcmp.ne.s32.totalorder %v467, 0
      %vm512 = vcmp.ne.s32.totalorder %v474, 0
      %vm513 = vcmp.ne.s32.totalorder %v481, 0
      %vm514 = vcmp.lt.s32.totalorder %v264, 0
      %vm515 = vcmp.lt.s32.totalorder %v271, 0
      %vm516 = vcmp.lt.s32.totalorder %v278, 0
      %vm517 = vcmp.lt.s32.totalorder %v285, 0
      %vm518 = vcmp.lt.s32.totalorder %v292, 0
      %vm519 = vcmp.lt.s32.totalorder %v299, 0
      %vm520 = vcmp.lt.s32.totalorder %v306, 0
      %vm521 = vcmp.lt.s32.totalorder %v313, 0
      %vm522 = vcmp.lt.s32.totalorder %v320, 0
      %vm523 = vcmp.lt.s32.totalorder %v327, 0
      %vm524 = vcmp.lt.s32.totalorder %v334, 0
      %vm525 = vcmp.lt.s32.totalorder %v341, 0
      %vm526 = vcmp.lt.s32.totalorder %v348, 0
      %vm527 = vcmp.lt.s32.totalorder %v355, 0
      %vm528 = vcmp.lt.s32.totalorder %v362, 0
      %vm529 = vcmp.lt.s32.totalorder %v369, 0
      %vm530 = vcmp.lt.s32.totalorder %v376, 0
      %vm531 = vcmp.lt.s32.totalorder %v383, 0
      %vm532 = vcmp.lt.s32.totalorder %v390, 0
      %vm533 = vcmp.lt.s32.totalorder %v397, 0
      %vm534 = vcmp.lt.s32.totalorder %v404, 0
      %vm535 = vcmp.lt.s32.totalorder %v411, 0
      %vm536 = vcmp.lt.s32.totalorder %v418, 0
      %vm537 = vcmp.lt.s32.totalorder %v425, 0
      %vm538 = vcmp.lt.s32.totalorder %v432, 0
      %vm539 = vcmp.lt.s32.totalorder %v439, 0
      %vm540 = vcmp.lt.s32.totalorder %v446, 0
      %vm541 = vcmp.lt.s32.totalorder %v453, 0
      %vm542 = vcmp.lt.s32.totalorder %v460, 0
      %vm543 = vcmp.lt.s32.totalorder %v467, 0
      %vm544 = vcmp.lt.s32.totalorder %v474, 0
      %vm545 = vcmp.lt.s32.totalorder %v481, 0
      %vm546 = vmand %vm514, %vm482
      %vm547 = vmand %vm515, %vm483
      %vm548 = vmand %vm516, %vm484
      %vm549 = vmand %vm517, %vm485
      %vm550 = vmand %vm518, %vm486
      %vm551 = vmand %vm519, %vm487
      %vm552 = vmand %vm520, %vm488
      %vm553 = vmand %vm521, %vm489
      %vm554 = vmand %vm522, %vm490
      %vm555 = vmand %vm523, %vm491
      %vm556 = vmand %vm524, %vm492
      %vm557 = vmand %vm525, %vm493
      %vm558 = vmand %vm526, %vm494
      %vm559 = vmand %vm527, %vm495
      %vm560 = vmand %vm528, %vm496
      %vm561 = vmand %vm529, %vm497
      %vm562 = vmand %vm530, %vm498
      %vm563 = vmand %vm531, %vm499
      %vm564 = vmand %vm532, %vm500
      %vm565 = vmand %vm533, %vm501
      %vm566 = vmand %vm534, %vm502
      %vm567 = vmand %vm535, %vm503
      %vm568 = vmand %vm536, %vm504
      %vm569 = vmand %vm537, %vm505
      %vm570 = vmand %vm538, %vm506
      %vm571 = vmand %vm539, %vm507
      %vm572 = vmand %vm540, %vm508
      %vm573 = vmand %vm541, %vm509
      %vm574 = vmand %vm542, %vm510
      %vm575 = vmand %vm543, %vm511
      %vm576 = vmand %vm544, %vm512
      %vm577 = vmand %vm545, %vm513
      %v578 = vadd.s32 %v264, 16
      %v579 = vadd.s32 %v271, 16
      %v580 = vadd.s32 %v278, 16
      %v581 = vadd.s32 %v285, 16
      %v582 = vadd.s32 %v292, 16
      %v583 = vadd.s32 %v299, 16
      %v584 = vadd.s32 %v306, 16
      %v585 = vadd.s32 %v313, 16
      %v586 = vadd.s32 %v320, 16
      %v587 = vadd.s32 %v327, 16
      %v588 = vadd.s32 %v334, 16
      %v589 = vadd.s32 %v341, 16
      %v590 = vadd.s32 %v348, 16
      %v591 = vadd.s32 %v355, 16
      %v592 = vadd.s32 %v362, 16
      %v593 = vadd.s32 %v369, 16
      %v594 = vadd.s32 %v376, 16
      %v595 = vadd.s32 %v383, 16
      %v596 = vadd.s32 %v390, 16
      %v597 = vadd.s32 %v397, 16
      %v598 = vadd.s32 %v404, 16
      %v599 = vadd.s32 %v411, 16
      %v600 = vadd.s32 %v418, 16
      %v601 = vadd.s32 %v425, 16
      %v602 = vadd.s32 %v432, 16
      %v603 = vadd.s32 %v439, 16
      %v604 = vadd.s32 %v446, 16
      %v605 = vadd.s32 %v453, 16
      %v606 = vadd.s32 %v460, 16
      %v607 = vadd.s32 %v467, 16
      %v608 = vadd.s32 %v474, 16
      %v609 = vadd.s32 %v481, 16
      %v610 = vsel %vm546, %v578, %v264
      %v611 = vsel %vm547, %v579, %v271
      %v612 = vsel %vm548, %v580, %v278
      %v613 = vsel %vm549, %v581, %v285
      %v614 = vsel %vm550, %v582, %v292
      %v615 = vsel %vm551, %v583, %v299
      %v616 = vsel %vm552, %v584, %v306
      %v617 = vsel %vm553, %v585, %v313
      %v618 = vsel %vm554, %v586, %v320
      %v619 = vsel %vm555, %v587, %v327
      %v620 = vsel %vm556, %v588, %v334
      %v621 = vsel %vm557, %v589, %v341
      %v622 = vsel %vm558, %v590, %v348
      %v623 = vsel %vm559, %v591, %v355
      %v624 = vsel %vm560, %v592, %v362
      %v625 = vsel %vm561, %v593, %v369
      %v626 = vsel %vm562, %v594, %v376
      %v627 = vsel %vm563, %v595, %v383
      %v628 = vsel %vm564, %v596, %v390
      %v629 = vsel %vm565, %v597, %v397
      %v630 = vsel %vm566, %v598, %v404
      %v631 = vsel %vm567, %v599, %v411
      %v632 = vsel %vm568, %v600, %v418
      %v633 = vsel %vm569, %v601, %v425
      %v634 = vsel %vm570, %v602, %v432
      %v635 = vsel %vm571, %v603, %v439
      %v636 = vsel %vm572, %v604, %v446
      %v637 = vsel %vm573, %v605, %v453
      %v638 = vsel %vm574, %v606, %v460
      %v639 = vsel %vm575, %v607, %v467
      %v640 = vsel %vm576, %v608, %v474
      %v641 = vsel %vm577, %v609, %v481
      %vm642 = vcmp.eq.s32.totalorder %v610, %v257
      %vm643 = vcmp.eq.s32.totalorder %v611, %v257
      %vm644 = vcmp.eq.s32.totalorder %v612, %v257
      %vm645 = vcmp.eq.s32.totalorder %v613, %v257
      %vm646 = vcmp.eq.s32.totalorder %v614, %v257
      %vm647 = vcmp.eq.s32.totalorder %v615, %v257
      %vm648 = vcmp.eq.s32.totalorder %v616, %v257
      %vm649 = vcmp.eq.s32.totalorder %v617, %v257
      %vm650 = vcmp.eq.s32.totalorder %v618, %v257
      %vm651 = vcmp.eq.s32.totalorder %v619, %v257
      %vm652 = vcmp.eq.s32.totalorder %v620, %v257
      %vm653 = vcmp.eq.s32.totalorder %v621, %v257
      %vm654 = vcmp.eq.s32.totalorder %v622, %v257
      %vm655 = vcmp.eq.s32.totalorder %v623, %v257
      %vm656 = vcmp.eq.s32.totalorder %v624, %v257
      %vm657 = vcmp.eq.s32.totalorder %v625, %v257
      %vm658 = vcmp.eq.s32.totalorder %v626, %v257
      %vm659 = vcmp.eq.s32.totalorder %v627, %v257
      %vm660 = vcmp.eq.s32.totalorder %v628, %v257
      %vm661 = vcmp.eq.s32.totalorder %v629, %v257
      %vm662 = vcmp.eq.s32.totalorder %v630, %v257
      %vm663 = vcmp.eq.s32.totalorder %v631, %v257
      %vm664 = vcmp.eq.s32.totalorder %v632, %v257
      %vm665 = vcmp.eq.s32.totalorder %v633, %v257
      %vm666 = vcmp.eq.s32.totalorder %v634, %v257
      %vm667 = vcmp.eq.s32.totalorder %v635, %v257
      %vm668 = vcmp.eq.s32.totalorder %v636, %v257
      %vm669 = vcmp.eq.s32.totalorder %v637, %v257
      %vm670 = vcmp.eq.s32.totalorder %v638, %v257
      %vm671 = vcmp.eq.s32.totalorder %v639, %v257
      %vm672 = vcmp.eq.s32.totalorder %v640, %v257
      %vm673 = vcmp.eq.s32.totalorder %v641, %v257
      %v674 = vsel %vm642, 1, 0
      %v675 = vsel %vm643, 1, 0
      %v676 = vsel %vm644, 1, 0
      %v677 = vsel %vm645, 1, 0
      %v678 = vsel %vm646, 1, 0
      %v679 = vsel %vm647, 1, 0
      %v680 = vsel %vm648, 1, 0
      %v681 = vsel %vm649, 1, 0
      %v682 = vsel %vm650, 1, 0
      %v683 = vsel %vm651, 1, 0
      %v684 = vsel %vm652, 1, 0
      %v685 = vsel %vm653, 1, 0
      %v686 = vsel %vm654, 1, 0
      %v687 = vsel %vm655, 1, 0
      %v688 = vsel %vm656, 1, 0
      %v689 = vsel %vm657, 1, 0
      %v690 = vsel %vm658, 1, 0
      %v691 = vsel %vm659, 1, 0
      %v692 = vsel %vm660, 1, 0
      %v693 = vsel %vm661, 1, 0
      %v694 = vsel %vm662, 1, 0
      %v695 = vsel %vm663, 1, 0
      %v696 = vsel %vm664, 1, 0
      %v697 = vsel %vm665, 1, 0
      %v698 = vsel %vm666, 1, 0
      %v699 = vsel %vm667, 1, 0
      %v700 = vsel %vm668, 1, 0
      %v701 = vsel %vm669, 1, 0
      %v702 = vsel %vm670, 1, 0
      %v703 = vsel %vm671, 1, 0
      %v704 = vsel %vm672, 1, 0
      %v705 = vsel %vm673, 1, 0
      %v706 = vcvt.s32.f32 %v674
      %v707 = vcvt.s32.f32 %v675
      %v708 = vcvt.s32.f32 %v676
      %v709 = vcvt.s32.f32 %v677
      %v710 = vcvt.s32.f32 %v678
      %v711 = vcvt.s32.f32 %v679
      %v712 = vcvt.s32.f32 %v680
      %v713 = vcvt.s32.f32 %v681
      %v714 = vcvt.s32.f32 %v682
      %v715 = vcvt.s32.f32 %v683
      %v716 = vcvt.s32.f32 %v684
      %v717 = vcvt.s32.f32 %v685
      %v718 = vcvt.s32.f32 %v686
      %v719 = vcvt.s32.f32 %v687
      %v720 = vcvt.s32.f32 %v688
      %v721 = vcvt.s32.f32 %v689
      %v722 = vcvt.s32.f32 %v690
      %v723 = vcvt.s32.f32 %v691
      %v724 = vcvt.s32.f32 %v692
      %v725 = vcvt.s32.f32 %v693
      %v726 = vcvt.s32.f32 %v694
      %v727 = vcvt.s32.f32 %v695
      %v728 = vcvt.s32.f32 %v696
      %v729 = vcvt.s32.f32 %v697
      %v730 = vcvt.s32.f32 %v698
      %v731 = vcvt.s32.f32 %v699
      %v732 = vcvt.s32.f32 %v700
      %v733 = vcvt.s32.f32 %v701
      %v734 = vcvt.s32.f32 %v702
      %v735 = vcvt.s32.f32 %v703
      %v736 = vcvt.s32.f32 %v704
      %v737 = vcvt.s32.f32 %v705
      %738 = vmatpush.msra.mxu0 %v721
      %739 = vmatpush.msra.mxu0 %v720
      %740 = vmatpush.msra.mxu0 %v719
      %741 = vmatpush.msra.mxu0 %v718
      %742 = vmatpush.msra.mxu0 %v717
      %743 = vmatpush.msra.mxu0 %v716
      %744 = vmatpush.msra.mxu0 %v715
      %745 = vmatpush.msra.mxu0 %v714
      %746 = vmatpush.msra.mxu0 %v713
      %747 = vmatpush.msra.mxu0 %v712
      %748 = vmatpush.msra.mxu0 %v711
      %749 = vmatpush.msra.mxu0 %v710
      %750 = vmatpush.msra.mxu0 %v709
      %751 = vmatpush.msra.mxu0 %v708
      %752 = vmatpush.msra.mxu0 %v707
      %753 = vmatpush.msra.mxu0 %v706
      %754 = vmatmul.f32.gmra.mxu0 %v216
      %v755 = vpop.f32.mrf.mxu0
      %v756 = vadd.f32 0.0, %v755
      %757 = vmatmul.f32.gmra.mxu0 %v220
      %v758 = vpop.f32.mrf.mxu0
      %v759 = vadd.f32 0.0, %v758
      %760 = vdwg.mxu0
      %761 = vmatpush.msra.mxu0 %v737
      %762 = vmatpush.msra.mxu0 %v736
      %763 = vmatpush.msra.mxu0 %v735
      %764 = vmatpush.msra.mxu0 %v734
      %765 = vmatpush.msra.mxu0 %v733
      %766 = vmatpush.msra.mxu0 %v732
      %767 = vmatpush.msra.mxu0 %v731
      %768 = vmatpush.msra.mxu0 %v730
      %769 = vmatpush.msra.mxu0 %v729
      %770 = vmatpush.msra.mxu0 %v728
      %771 = vmatpush.msra.mxu0 %v727
      %772 = vmatpush.msra.mxu0 %v726
      %773 = vmatpush.msra.mxu0 %v725
      %774 = vmatpush.msra.mxu0 %v724
      %775 = vmatpush.msra.mxu0 %v723
      %776 = vmatpush.msra.mxu0 %v722
      %777 = vmatmul.f32.gmra.mxu0 %v218
      %v778 = vpop.f32.mrf.mxu0
      %v779 = vadd.f32 %v756, %v778
      %780 = vmatmul.f32.gmra.mxu0 %v222
      %v781 = vpop.f32.mrf.mxu0
      %v782 = vadd.f32 %v759, %v781
      %783 = vdwg.mxu0
      %v784 = vsub.f32 %v110, %v144
      %v785 = vsub.f32 %v112, %v145
      %v786 = vlog2.pop %v779
      %v787 = vmul.f32 %v786, 0.6931472
      %v788 = vlog2.pop %v782
      %v789 = vmul.f32 %v788, 0.6931472
      %v790 = vsub.f32 %v784, %v787
      %v791 = vsub.f32 %v785, %v789
      %v792 = vld [vmem:[#allocation2] sm:$0xff]
      %v793 = vld [vmem:[#allocation2 + $0x8] sm:$0xff]
      %v794 = vshll.u32 %v792, 3
      %v795 = vshll.u32 %v793, 3
      %796 = vset.pattern.permute.xlu0 0
      %797 = vperm.xlu0 %796, %v794
      %v798 = vpop.permute.xlu0 %797
      %799 = vset.pattern.permute.xlu0 0
      %800 = vperm.xlu0 %799, %v795
      %v801 = vpop.permute.xlu0 %800
      %v802 = vshra.s32 %v798, %v257
      %v803 = vshra.s32 %v801, %v257
      %v804 = vadd.s32 %v257, 3
      %v805 = vadd.s32 %v804, 3
      %v806 = vshra.s32 %v798, %v805
      %v807 = vshra.s32 %v801, %v805
      %v808 = vor.u32 %v802, %v806
      %v809 = vor.u32 %v803, %v807
      %v810 = vand.u32 %v808, 1
      %v811 = vand.u32 %v809, 1
      %vm812 = vcmp.gt.s32.totalorder %v810, 0
      %vm813 = vcmp.gt.s32.totalorder %v811, 0
      %v814 = vsel %vm812, 3, 4
      %v815 = vsel %vm813, 3, 4
      %v816 = vsub.s32 %v257, 2
      %v817 = vadd.s32 %v816, 3
      %v818 = vshra.s32 %v798, %v817
      %v819 = vshra.s32 %v801, %v817
      %v820 = vadd.s32 %v257, 2
      %v821 = vadd.s32 %v820, 3
      %v822 = vshra.s32 %v798, %v821
      %v823 = vshra.s32 %v801, %v821
      %v824 = vor.u32 %v818, %v822
      %v825 = vor.u32 %v819, %v823
      %v826 = vand.u32 %v824, 1
      %v827 = vand.u32 %v825, 1
      %vm828 = vcmp.gt.s32.totalorder %v826, 0
      %vm829 = vcmp.gt.s32.totalorder %v827, 0
      %v830 = vsel %vm828, 2, %v814
      %v831 = vsel %vm829, 2, %v815
      %v832 = vsub.s32 %v257, 1
      %v833 = vadd.s32 %v832, 3
      %v834 = vshra.s32 %v798, %v833
      %v835 = vshra.s32 %v801, %v833
      %v836 = vadd.s32 %v257, 1
      %v837 = vadd.s32 %v836, 3
      %v838 = vshra.s32 %v798, %v837
      %v839 = vshra.s32 %v801, %v837
      %v840 = vor.u32 %v834, %v838
      %v841 = vor.u32 %v835, %v839
      %v842 = vand.u32 %v840, 1
      %v843 = vand.u32 %v841, 1
      %vm844 = vcmp.gt.s32.totalorder %v842, 0
      %vm845 = vcmp.gt.s32.totalorder %v843, 0
      %v846 = vsel %vm844, 1, %v830
      %v847 = vsel %vm845, 1, %v831
      %v848 = vshra.s32 %v798, %v804
      %v849 = vshra.s32 %v801, %v804
      %v850 = vand.u32 %v848, 1
      %v851 = vand.u32 %v849, 1
      %vm852 = vcmp.gt.s32.totalorder %v850, 0
      %vm853 = vcmp.gt.s32.totalorder %v851, 0
      %v854 = vsel %vm852, 0, %v846
      %v855 = vsel %vm853, 0, %v847
      %v856 = vcvt.s32.f32 %v854
      %v857 = vcvt.s32.f32 %v855
      %vm858 = vcmp.le.s32.totalorder %v854, 3
      %vm859 = vcmp.le.s32.totalorder %v855, 3
      %v860 = vmul.f32 %v856, -0.5
      %v861 = vmul.f32 %v857, -0.5
      %v862 = vmul.f32 %v860, %v856
      %v863 = vmul.f32 %v861, %v857
      %v864 = vmul.f32 %v862, 1.442695
      %v865 = vpow.pop %v864
      %v866 = vmul.f32 %v863, 1.442695
      %v867 = vpow.pop %v866
      %v868 = vsel %vm858, %v865, 0.0
      %v869 = vsel %vm859, %v867, 0.0
      %v870 = vmul.f32 %v868, %v790
      %v871 = vmul.f32 %v869, %v791
      %v872 = vsel %vm190, %v870, 0.0
      %873 = vadd.xlane.f32.xlu0 %v872
      %v874 = vpop.xlane.xlu0 %873
      %v875 = vsel %vm190, %v871, 0.0
      %876 = vadd.xlane.f32.xlu0 %v875
      %v877 = vpop.xlane.xlu0 %876
      %v878 = vsub.f32 0.0, %v874
      %v879 = vsub.f32 0.0, %v877
      %880 = vst.msk [vmem:[%s2] sm:$0xff] %vm104, %v878
      %881 = vst.msk [vmem:[%s2 + $0x8] sm:$0xff] %vm104, %v879
    $region25: #{tpu_custom_call.1} parent=1 // pred_fallthru
      _
    // Predicated region
    $region26: #{tpu_custom_call.1} parent=1 // pred_check
      _
    $region27: #{tpu_custom_call.1} parent=1 // pred_check_branch
      %883 = sbr.rel (0) target = $region29
    $region28: #{tpu_custom_call.1} parent=1 // pred_region
      _
    $region29: #{tpu_custom_call.1} parent=1 // pred_fallthru
      _
    // Predicated region
    $region30: #{tpu_custom_call.1} parent=1 // pred_check
      _
    $region31: #{tpu_custom_call.1} parent=1 // pred_check_branch
      %885 = sbr.rel (0) target = $region33
    $region32: #{tpu_custom_call.1} parent=1 // pred_region
      _
    $region33: #{tpu_custom_call.1} parent=1 // pred_fallthru
      _
    %886 = vsyncpa [#allocation4], 1
    %887 = vsyncpa [#allocation6], 1

</llo_original>
